<compile_context>
chip_gen: v5e
topology: v5e:2x2
jax: 0.10.0
libtpu: 0.0.40
codegen_flags: <defaults>
</compile_context>

<pallas_src>
import functools

import jax
import jax.numpy as jnp
from jax.experimental import pallas as pl
from jax.experimental.pallas import tpu as pltpu


# ----------------------------------------------------------------------------
# Pallas kernel: identity copy (the entire forward pass of the module).
# ----------------------------------------------------------------------------
def _copy_kernel(x_ref, o_ref):
    o_ref[...] = x_ref[...]


_SUBLANE = 8
_LANE_CANDIDATES = (8192, 4096, 2048, 1024, 512, 256, 128)
# ~2 MiB per buffer -> with double-buffered in + out that's ~8 MiB of VMEM,
# comfortably inside the scoped-VMEM default on v5e/v6e/v7x.
_TARGET_BLOCK_BYTES = 2 * 1024 * 1024


def _choose_slab(n_elems):
    """Pick a lane/sublane-dense (rows, lane) factorization of n_elems, or None."""
    for lane in _LANE_CANDIDATES:
        if n_elems % lane == 0:
            rows = n_elems // lane
            if rows % _SUBLANE == 0:
                return rows, lane
    return None


@functools.partial(jax.jit, static_argnames=("alias_in_out",))
def enhanced_masked_audio_transformer_forward(audio, alias_in_out=False):
    """Exact forward pass of EnhancedMaskedAudioTransformer: returns `audio`.

    audio: (B, T) array.  Implemented as a lane-dense tiled Pallas copy.
    If `alias_in_out=True`, the pallas output aliases input 0 (only a win when
    the caller donates `audio`; otherwise XLA inserts a protective copy).
    """
    B, T = audio.shape
    n = B * T
    itemsize = jnp.dtype(audio.dtype).itemsize

    slab = _choose_slab(n)
    if slab is not None:
        rows, lane = slab
        x2d = audio.reshape(rows, lane)          # free bitcast-reshape (contiguous)
        padded = False
    else:
        # Ragged total size: pad the flat array up to a dense slab.
        lane = 1024
        rows = pl.cdiv(n, lane)
        rows = ((rows + _SUBLANE - 1) // _SUBLANE) * _SUBLANE
        flat = jnp.pad(audio.reshape(-1), (0, rows * lane - n))
        x2d = flat.reshape(rows, lane)
        padded = True

    # Largest multiple-of-8 row count with block_bytes <= target.
    max_rows = max(_SUBLANE,
                   (_TARGET_BLOCK_BYTES // (lane * itemsize)) // _SUBLANE * _SUBLANE)
    block_rows = min(rows, max_rows)
    grid = (pl.cdiv(rows, block_rows),)          # partial last block handled by Pallas

    y2d = pl.pallas_call(
        _copy_kernel,
        out_shape=jax.ShapeDtypeStruct((rows, lane), audio.dtype),
        grid=grid,
        in_specs=[pl.BlockSpec((block_rows, lane), lambda i: (i, 0))],
        out_specs=pl.BlockSpec((block_rows, lane), lambda i: (i, 0)),
        compiler_params=pltpu.CompilerParams(
            dimension_semantics=("parallel",),   # shards across v7x's 2 TensorCores
        ),
        input_output_aliases=({0: 0} if alias_in_out else {}),
    )(x2d)

    if padded:
        return y2d.reshape(-1)[:n].reshape(B, T)
    return y2d.reshape(B, T)


# ----------------------------------------------------------------------------
# Deterministic parameter construction (shapes follow the module __init__).
# Built for parameterization fidelity only — NOT used by forward(), matching
# the PyTorch reference whose forward ignores every submodule.
# TODO(synk): if a future revision wires the encoder/decoder into forward(),
#             port those blocks (LayerNorm + MHA + depthwise conv + MLP) into
#             real Pallas kernels.
# ----------------------------------------------------------------------------
def _xavier(key, shape):
    fan_out, fan_in = shape
    bound = (6.0 / (fan_in + fan_out)) ** 0.5
    return jax.random.uniform(key, shape, jnp.float32, -bound, bound)


def build_params(key, n_mels=8, hop_length=512, max_len=160000,
                 patch_size=4, embed_dim=32, depth=2, heads=4):
    seq_len = max_len // hop_length + 1
    num_patches = seq_len // patch_size
    ks = iter(jax.random.split(key, 256))

    def block_params(dim):
        return {
            "norm1_w": jnp.ones((dim,)), "norm1_b": jnp.zeros((dim,)),
            "attn_in_proj_w": _xavier(next(ks), (3 * dim, dim)),
            "attn_in_proj_b": jnp.zeros((3 * dim,)),
            "attn_out_proj_w": _xavier(next(ks), (dim, dim)),
            "attn_out_proj_b": jnp.zeros((dim,)),
            "norm2_w": jnp.ones((dim,)), "norm2_b": jnp.zeros((dim,)),
            "tc_conv_w": jax.random.uniform(next(ks), (dim, 1, 3), jnp.float32,
                                            -(1.0 / 3.0) ** 0.5, (1.0 / 3.0) ** 0.5),
            "tc_conv_b": jnp.zeros((dim,)),
            "tc_norm_w": jnp.ones((dim,)), "tc_norm_b": jnp.zeros((dim,)),
            "norm3_w": jnp.ones((dim,)), "norm3_b": jnp.zeros((dim,)),
            "mlp_w1": _xavier(next(ks), (4 * dim, dim)), "mlp_b1": jnp.zeros((4 * dim,)),
            "mlp_w2": _xavier(next(ks), (dim, 4 * dim)), "mlp_b2": jnp.zeros((dim,)),
        }

    return {
        "patch_embed_w": _xavier(next(ks), (embed_dim, patch_size * n_mels)),
        "patch_embed_b": jnp.zeros((embed_dim,)),
        "pos": jnp.zeros((1, num_patches, embed_dim)),
        "mask_token": jnp.zeros((1, 1, embed_dim)),
        "encoder": [block_params(embed_dim) for _ in range(depth)],
        "decoder": [block_params(embed_dim) for _ in range(depth // 2)],
        "pred_w": _xavier(next(ks), (patch_size * n_mels, embed_dim)),
        "pred_b": jnp.zeros((patch_size * n_mels,)),
        "feat_norm1_w": jnp.ones((embed_dim,)), "feat_norm1_b": jnp.zeros((embed_dim,)),
        "feat_lin_w": _xavier(next(ks), (embed_dim, embed_dim)),
        "feat_lin_b": jnp.zeros((embed_dim,)),
        "feat_norm2_w": jnp.ones((embed_dim,)), "feat_norm2_b": jnp.zeros((embed_dim,)),
    }


# ----------------------------------------------------------------------------
# Demo / self-test
# ----------------------------------------------------------------------------
if __name__ == "__main__":
    key = jax.random.PRNGKey(0)
    k_audio, k_params = jax.random.split(key)

    # Small, TPU-friendly shapes: batch=2, samples=2048 (raw waveform input).
    audio = jax.random.normal(k_audio, (2, 2048), dtype=jnp.float32)

    # Parameters exist (deterministically initialized) but, matching the
    # reference forward(), are not consumed.
    _params = build_params(k_params)

    out = enhanced_masked_audio_transformer_forward(audio)
    out = jax.block_until_ready(out)

    assert out.shape == audio.shape and out.dtype == audio.dtype
    assert bool(jnp.all(out == audio))
    print("KERNEL_OK")
</pallas_src>

<mosaic_0001>
module attributes {stable_mosaic.version = 11 : i64} {
  func.func @_copy_kernel(%arg0: i32, %arg1: memref<8x512xf32, #tpu.memory_space<vmem>>, %arg2: memref<8x512xf32, #tpu.memory_space<vmem>>) attributes {dimension_semantics = [#tpu.dimension_semantics<parallel>], iteration_bounds = array<i64: 1>, scalar_prefetch = 0 : i64, scratch_operands = 0 : i64, tpu.core_type = #tpu.core_type<tc>, window_params = [{transform_indices = @transform_0, window_bounds = array<i64: 8, 512>}, {transform_indices = @transform_1, window_bounds = array<i64: 8, 512>}]} {
    %c0 = arith.constant 0 : index
    %c0_0 = arith.constant 0 : index
    %0 = vector.load %arg1[%c0, %c0_0] : memref<8x512xf32, #tpu.memory_space<vmem>>, vector<8x512xf32>
    %c0_1 = arith.constant 0 : index
    %c0_2 = arith.constant 0 : index
    %1 = vector.load %arg2[%c0_1, %c0_2] : memref<8x512xf32, #tpu.memory_space<vmem>>, vector<8x512xf32>
    tpu.vector_store %arg2[%c0_1, %c0_2], %0 {strides = array<i32>} : memref<8x512xf32, #tpu.memory_space<vmem>>, vector<8x512xf32>,
    return
  }
  func.func @transform_0(%arg0: i32) -> (i32, i32) {
    %c0_i32 = arith.constant 0 : i32
    %c0_i32_0 = arith.constant 0 : i32
    return %arg0, %c0_i32 : i32, i32
  }
  func.func @transform_1(%arg0: i32) -> (i32, i32) {
    %c0_i32 = arith.constant 0 : i32
    %c0_i32_0 = arith.constant 0 : i32
    return %arg0, %c0_i32 : i32, i32
  }
}

</mosaic_0001>

<llo_original>
// kernel: enhanced_masked_audio_transformer_forward.1
$region0: #{enhanced_masked_audio_transformer_forward.1}
  #allocation0 [shape = 'u32[]', space=smem, size = 0x4, offset = 0x4, fixed_abs, tag = 'smem constant byte address 0x4 - core index']
  #allocation1 [shape = 'u32[72,128]{1,0:T(1,128)}', space=vmem, size = 0x9000, scoped, tag = 'internal scratch']
  %s0 = inlined_call_operand.vmem [shape: f32[8,512], index: 0, kind: input, shape index: {}]
  %s1 = inlined_call_operand.vmem [shape: f32[8,512], index: 1, kind: output, shape index: {}]
  %s2 = sld [smem:[#allocation0]]
  $region14: #{enhanced_masked_audio_transformer_forward.1} parent=0
    _
  %s4 = ssub.s32 1, %s2
  %s5 = scalar_select 0, %s4, %s2
  // Predicated region
  $region2: #{enhanced_masked_audio_transformer_forward.1} parent=0 // pred_check
    _
  $region3: #{enhanced_masked_audio_transformer_forward.1} parent=0 // pred_check_branch
    %7 = sbr.rel (0) target = $region5
  $region4: #{enhanced_masked_audio_transformer_forward.1} parent=0 // pred_region
    _
  $region5: #{enhanced_masked_audio_transformer_forward.1} parent=0 // pred_fallthru
    _
  %v8 = vld [vmem:[%s0] sm:$0xff]
  %v9 = vld [vmem:[%s0 + $0x8] sm:$0xff]
  %v10 = vld [vmem:[%s0 + $0x10] sm:$0xff]
  %v11 = vld [vmem:[%s0 + $0x18] sm:$0xff]
  %12 = vst [vmem:[%s1] sm:$0xff] %v8
  %13 = vst [vmem:[%s1 + $0x8] sm:$0xff] %v9
  %14 = vst [vmem:[%s1 + $0x10] sm:$0xff] %v10
  %15 = vst [vmem:[%s1 + $0x18] sm:$0xff] %v11
  // Predicated region
  $region6: #{enhanced_masked_audio_transformer_forward.1} parent=0 // pred_check
    _
  $region7: #{enhanced_masked_audio_transformer_forward.1} parent=0 // pred_check_branch
    %17 = sbr.rel (0) target = $region9
  $region8: #{enhanced_masked_audio_transformer_forward.1} parent=0 // pred_region
    _
  $region9: #{enhanced_masked_audio_transformer_forward.1} parent=0 // pred_fallthru
    _
  // Predicated region
  $region10: #{enhanced_masked_audio_transformer_forward.1} parent=0 // pred_check
    _
  $region11: #{enhanced_masked_audio_transformer_forward.1} parent=0 // pred_check_branch
    %19 = sbr.rel (0) target = $region13
  $region12: #{enhanced_masked_audio_transformer_forward.1} parent=0 // pred_region
    _
  $region13: #{enhanced_masked_audio_transformer_forward.1} parent=0 // pred_fallthru
    _

</llo_original>
